<compile_context>
chip_gen: v5e
topology: v5e:2x2
jax: 0.10.0
libtpu: 0.0.40
codegen_flags: <defaults>
</compile_context>

<pallas_src>
import jax
import jax.numpy as jnp
from jax.experimental import pallas as pl
from jax.experimental.pallas import tpu as pltpu


def _round_up(x, m):
    return ((x + m - 1) // m) * m


def critic_kernel(s_ref, a_ref, w1_ref, b1_ref, w2_ref, b2_ref, w3_ref, b3_ref,
                  o_ref, x_ref):
    S = s_ref.shape[1]

    # Pack s|a into one VMEM scratch tile -> single K=(S+A) fc1 matmul
    # (kernel-side "concat"; avoids two tiny-K MXU pushes and any XLA concat).
    x_ref[:, :S] = s_ref[...]
    x_ref[:, S:] = a_ref[...]
    x = x_ref[...].astype(jnp.bfloat16)

    # fc1: bf16 operands, f32 accumulation; bias + ReLU in f32.
    h1 = jnp.dot(x, w1_ref[...], preferred_element_type=jnp.float32)
    h1 = jnp.maximum(h1 + b1_ref[...], 0.0)

    # fc2
    h2 = jnp.dot(h1.astype(jnp.bfloat16), w2_ref[...],
                 preferred_element_type=jnp.float32)
    h2 = jnp.maximum(h2 + b2_ref[...], 0.0)

    # fc3: contract the hidden axis of w3 [1,H] and h2 [tile_b,H] so the
    # result is already lane-dense (1, tile_b) -- no (tile_b,1) masked stores.
    q = jax.lax.dot_general(
        w3_ref[...], h2,
        dimension_numbers=(((1,), (1,)), ((), ())),
        preferred_element_type=jnp.float32)           # (1, tile_b)
    o_ref[...] = (q + b3_ref[...]).astype(o_ref.dtype)


def _choose_tile_b(B):
    if B <= 128:
        return max(8, _round_up(B, 8))
    Bp = _round_up(B, 128)
    # At least two grid steps (v7x has 2 TensorCores and shards "parallel"
    # grid axes across them); cap tiles at 1024 rows -- large enough that
    # per-grid-step overhead (~0.35 us) is amortized, small enough that f32
    # activation streaming stays far below v5e's 16 MiB scoped-VMEM default.
    return min(1024, max(128, _round_up(Bp // 2, 128)))


def critic_forward(states, actions, params, *, tile_b=None):
    """states: [B, S], actions: [B, A] -> q: [B, 1] (float32)."""
    w1, b1, w2, b2, w3, b3 = params
    states = states.astype(jnp.float32)
    actions = actions.astype(jnp.float32)
    B, S = states.shape
    A = actions.shape[1]

    if tile_b is None:
        tile_b = _choose_tile_b(B)
    Bp = _round_up(B, tile_b)
    if Bp != B:
        states = jnp.pad(states, ((0, Bp - B), (0, 0)))
        actions = jnp.pad(actions, ((0, Bp - B), (0, 0)))

    num_tiles = Bp // tile_b
    grid = (num_tiles,)

    def act_spec(feat):
        return pl.BlockSpec((tile_b, feat), lambda i: (i, 0))

    def weight_spec(shape):
        # Constant index_map: weights are DMA'd once and stay VMEM-resident
        # across all batch-tile grid steps.
        return pl.BlockSpec(shape, lambda i: (0, 0))

    out = pl.pallas_call(
        critic_kernel,
        # Lane-dense output: one (1, tile_b) row per grid step.
        out_shape=jax.ShapeDtypeStruct((num_tiles, tile_b), jnp.float32),
        grid=grid,
        in_specs=[
            act_spec(S),
            act_spec(A),
            weight_spec(w1.shape),
            weight_spec(b1.shape),
            weight_spec(w2.shape),
            weight_spec(b2.shape),
            weight_spec(w3.shape),
            weight_spec(b3.shape),
        ],
        out_specs=pl.BlockSpec((1, tile_b), lambda i: (i, 0)),
        scratch_shapes=[pltpu.VMEM((tile_b, S + A), jnp.float32)],
        compiler_params=pltpu.CompilerParams(
            dimension_semantics=("parallel",)),
    )(states, actions, w1, b1, w2, b2, w3, b3)

    # (num_tiles, tile_b) rows flatten back to batch order; drop padding.
    return out.reshape(Bp, 1)[:B]


def init_critic_params(key, total_state_dim, total_action_dim, hidden=128):
    """Deterministic init mimicking nn.Linear's U(-1/sqrt(fan_in), 1/sqrt(fan_in)).

    Returns (w1 [S+A,H] bf16, b1 [1,H] f32, w2 [H,H] bf16, b2 [1,H] f32,
             w3 [1,H] f32, b3 [1,1] f32).
    """
    S, A, H = total_state_dim, total_action_dim, hidden
    in_dim = S + A
    keys = jax.random.split(key, 6)

    b1_bound = 1.0 / jnp.sqrt(jnp.array(in_dim, jnp.float32))
    w1 = jax.random.uniform(keys[0], (in_dim, H), jnp.float32, -b1_bound, b1_bound)
    b1 = jax.random.uniform(keys[1], (1, H), jnp.float32, -b1_bound, b1_bound)

    b2_bound = 1.0 / jnp.sqrt(jnp.array(H, jnp.float32))
    w2 = jax.random.uniform(keys[2], (H, H), jnp.float32, -b2_bound, b2_bound)
    b2 = jax.random.uniform(keys[3], (1, H), jnp.float32, -b2_bound, b2_bound)

    b3_bound = 1.0 / jnp.sqrt(jnp.array(H, jnp.float32))
    # fc3 weight stored lane-major as [1, H] for the in-kernel contraction.
    w3 = jax.random.uniform(keys[4], (1, H), jnp.float32, -b3_bound, b3_bound)
    b3 = jax.random.uniform(keys[5], (1, 1), jnp.float32, -b3_bound, b3_bound)

    # Store matmul weights as bf16 (MXU-native); biases / fc3 stay f32.
    return (w1.astype(jnp.bfloat16), b1, w2.astype(jnp.bfloat16), b2, w3, b3)


if __name__ == "__main__":
    key = jax.random.PRNGKey(0)
    k_s, k_a, k_p = jax.random.split(key, 3)

    batch = 8
    total_state_dim = 24   # e.g. several agents' observations concatenated
    total_action_dim = 8   # e.g. several agents' actions concatenated

    states = jax.random.normal(k_s, (batch, total_state_dim), jnp.float32)
    actions = jax.random.normal(k_a, (batch, total_action_dim), jnp.float32)
    params = init_critic_params(k_p, total_state_dim, total_action_dim)

    q = critic_forward(states, actions, params)
    jax.block_until_ready(q)
    assert q.shape == (batch, 1)

    w1, b1, w2, b2, w3, b3 = params
    x = jnp.concatenate([states, actions], axis=1)

    # Reference 1: same bf16-operand / f32-accumulate math as the kernel.
    r = jnp.dot(x.astype(jnp.bfloat16), w1, preferred_element_type=jnp.float32)
    r = jnp.maximum(r + b1, 0.0)
    r = jnp.dot(r.astype(jnp.bfloat16), w2, preferred_element_type=jnp.float32)
    r = jnp.maximum(r + b2, 0.0)
    ref_bf16 = r @ w3.T + b3
    assert jnp.allclose(q, ref_bf16, atol=1e-3, rtol=1e-3)

    # Reference 2: full-f32 PyTorch-semantics check (loose tol: bf16 matmuls
    # are a deliberate precision tradeoff).
    r32 = jnp.maximum(x @ w1.astype(jnp.float32) + b1, 0.0)
    r32 = jnp.maximum(r32 @ w2.astype(jnp.float32) + b2, 0.0)
    ref_f32 = r32 @ w3.T + b3
    assert jnp.allclose(q, ref_f32, atol=3e-2, rtol=3e-2)

    print("KERNEL_OK")
</pallas_src>

<mosaic_0001>
module attributes {stable_mosaic.version = 11 : i64} {
  func.func @critic_kernel(%arg0: i32, %arg1: memref<8x24xf32, #tpu.memory_space<vmem>>, %arg2: memref<8x8xf32, #tpu.memory_space<vmem>>, %arg3: memref<32x128xbf16, #tpu.memory_space<vmem>>, %arg4: memref<1x128xf32, #tpu.memory_space<vmem>>, %arg5: memref<128x128xbf16, #tpu.memory_space<vmem>>, %arg6: memref<1x128xf32, #tpu.memory_space<vmem>>, %arg7: memref<1x128xf32, #tpu.memory_space<vmem>>, %arg8: memref<1x1xf32, #tpu.memory_space<vmem>>, %arg9: memref<1x8xf32, #tpu.memory_space<vmem>>, %arg10: memref<8x32xf32, #tpu.memory_space<vmem>>) attributes {dimension_semantics = [#tpu.dimension_semantics<parallel>], iteration_bounds = array<i64: 1>, scalar_prefetch = 0 : i64, scratch_operands = 1 : i64, tpu.core_type = #tpu.core_type<tc>, window_params = [{transform_indices = @transform_0, window_bounds = array<i64: 8, 24>}, {transform_indices = @transform_1, window_bounds = array<i64: 8, 8>}, {pipeline_mode = #tpu.pipeline_mode<synchronous>, transform_indices = @transform_2, window_bounds = array<i64: 32, 128>}, {pipeline_mode = #tpu.pipeline_mode<synchronous>, transform_indices = @transform_3, window_bounds = array<i64: 1, 128>}, {pipeline_mode = #tpu.pipeline_mode<synchronous>, transform_indices = @transform_4, window_bounds = array<i64: 128, 128>}, {pipeline_mode = #tpu.pipeline_mode<synchronous>, transform_indices = @transform_5, window_bounds = array<i64: 1, 128>}, {pipeline_mode = #tpu.pipeline_mode<synchronous>, transform_indices = @transform_6, window_bounds = array<i64: 1, 128>}, {pipeline_mode = #tpu.pipeline_mode<synchronous>, transform_indices = @transform_7, window_bounds = array<i64: 1, 1>}, {transform_indices = @transform_8, window_bounds = array<i64: 1, 8>}]} {
    %c0 = arith.constant 0 : index
    %c0_0 = arith.constant 0 : index
    %0 = vector.load %arg1[%c0, %c0_0] : memref<8x24xf32, #tpu.memory_space<vmem>>, vector<8x24xf32>
    %c0_1 = arith.constant 0 : index
    %c0_2 = arith.constant 0 : index
    %1 = vector.load %arg10[%c0_1, %c0_2] : memref<8x32xf32, #tpu.memory_space<vmem>>, vector<8x24xf32>
    tpu.vector_store %arg10[%c0_1, %c0_2], %0 {strides = array<i32>} : memref<8x32xf32, #tpu.memory_space<vmem>>, vector<8x24xf32>,
    %c0_3 = arith.constant 0 : index
    %c0_4 = arith.constant 0 : index
    %2 = vector.load %arg2[%c0_3, %c0_4] : memref<8x8xf32, #tpu.memory_space<vmem>>, vector<8x8xf32>
    %c0_5 = arith.constant 0 : index
    %c24 = arith.constant 24 : index
    %3 = vector.load %arg10[%c0_5, %c24] : memref<8x32xf32, #tpu.memory_space<vmem>>, vector<8x8xf32>
    tpu.vector_store %arg10[%c0_5, %c24], %2 {strides = array<i32>} : memref<8x32xf32, #tpu.memory_space<vmem>>, vector<8x8xf32>,
    %c0_6 = arith.constant 0 : index
    %c0_7 = arith.constant 0 : index
    %4 = vector.load %arg10[%c0_6, %c0_7] : memref<8x32xf32, #tpu.memory_space<vmem>>, vector<8x32xf32>
    %5 = arith.truncf %4 : vector<8x32xf32> to vector<8x32xbf16>
    %c0_8 = arith.constant 0 : index
    %c0_9 = arith.constant 0 : index
    %6 = vector.load %arg3[%c0_8, %c0_9] : memref<32x128xbf16, #tpu.memory_space<vmem>>, vector<32x128xbf16>
    %cst = arith.constant dense<0.000000e+00> : vector<8x128xf32>
    %7 = tpu.matmul %5, %6, %cst {dimension_numbers = #tpu.dot_dimension_numbers<[1], [0], [0], [1], [0, 0, 1, 1], [], []>} : vector<8x32xbf16>, vector<32x128xbf16>, vector<8x128xf32> -> vector<8x128xf32>
    %c0_10 = arith.constant 0 : index
    %c0_11 = arith.constant 0 : index
    %8 = vector.load %arg4[%c0_10, %c0_11] : memref<1x128xf32, #tpu.memory_space<vmem>>, vector<1x128xf32>
    %9 = vector.broadcast %8 : vector<1x128xf32> to vector<8x128xf32>
    %10 = arith.addf %7, %9 : vector<8x128xf32>
    %cst_12 = arith.constant 0.000000e+00 : f32
    %11 = vector.broadcast %cst_12 : f32 to vector<8x128xf32>
    %12 = arith.maximumf %10, %11 : vector<8x128xf32>
    %13 = arith.truncf %12 : vector<8x128xf32> to vector<8x128xbf16>
    %c0_13 = arith.constant 0 : index
    %c0_14 = arith.constant 0 : index
    %14 = vector.load %arg5[%c0_13, %c0_14] : memref<128x128xbf16, #tpu.memory_space<vmem>>, vector<128x128xbf16>
    %cst_15 = arith.constant dense<0.000000e+00> : vector<8x128xf32>
    %15 = tpu.matmul %13, %14, %cst_15 {dimension_numbers = #tpu.dot_dimension_numbers<[1], [0], [0], [1], [0, 0, 1, 1], [], []>} : vector<8x128xbf16>, vector<128x128xbf16>, vector<8x128xf32> -> vector<8x128xf32>
    %c0_16 = arith.constant 0 : index
    %c0_17 = arith.constant 0 : index
    %16 = vector.load %arg6[%c0_16, %c0_17] : memref<1x128xf32, #tpu.memory_space<vmem>>, vector<1x128xf32>
    %17 = vector.broadcast %16 : vector<1x128xf32> to vector<8x128xf32>
    %18 = arith.addf %15, %17 : vector<8x128xf32>
    %cst_18 = arith.constant 0.000000e+00 : f32
    %19 = vector.broadcast %cst_18 : f32 to vector<8x128xf32>
    %20 = arith.maximumf %18, %19 : vector<8x128xf32>
    %c0_19 = arith.constant 0 : index
    %c0_20 = arith.constant 0 : index
    %21 = vector.load %arg7[%c0_19, %c0_20] : memref<1x128xf32, #tpu.memory_space<vmem>>, vector<1x128xf32>
    %cst_21 = arith.constant dense<0.000000e+00> : vector<1x8xf32>
    %22 = tpu.matmul %21, %20, %cst_21 {dimension_numbers = #tpu.dot_dimension_numbers<[1], [1], [0], [0], [0, 0, 1, 0], [], []>} : vector<1x128xf32>, vector<8x128xf32>, vector<1x8xf32> -> vector<1x8xf32>
    %c0_22 = arith.constant 0 : index
    %c0_23 = arith.constant 0 : index
    %23 = vector.load %arg8[%c0_22, %c0_23] : memref<1x1xf32, #tpu.memory_space<vmem>>, vector<1x1xf32>
    %24 = vector.broadcast %23 : vector<1x1xf32> to vector<1x8xf32>
    %25 = arith.addf %22, %24 : vector<1x8xf32>
    %c0_24 = arith.constant 0 : index
    %c0_25 = arith.constant 0 : index
    %26 = vector.load %arg9[%c0_24, %c0_25] : memref<1x8xf32, #tpu.memory_space<vmem>>, vector<1x8xf32>
    tpu.vector_store %arg9[%c0_24, %c0_25], %25 {strides = array<i32>} : memref<1x8xf32, #tpu.memory_space<vmem>>, vector<1x8xf32>,
    return
  }
  func.func @transform_0(%arg0: i32) -> (i32, i32) {
    %c0_i32 = arith.constant 0 : i32
    %c0_i32_0 = arith.constant 0 : i32
    return %arg0, %c0_i32 : i32, i32
  }
  func.func @transform_1(%arg0: i32) -> (i32, i32) {
    %c0_i32 = arith.constant 0 : i32
    %c0_i32_0 = arith.constant 0 : i32
    return %arg0, %c0_i32 : i32, i32
  }
  func.func @transform_2(%arg0: i32) -> (i32, i32) {
    %c0_i32 = arith.constant 0 : i32
    %c0_i32_0 = arith.constant 0 : i32
    %c0_i32_1 = arith.constant 0 : i32
    return %c0_i32, %c0_i32_0 : i32, i32
  }
  func.func @transform_3(%arg0: i32) -> (i32, i32) {
    %c0_i32 = arith.constant 0 : i32
    %c0_i32_0 = arith.constant 0 : i32
    %c0_i32_1 = arith.constant 0 : i32
    return %c0_i32, %c0_i32_0 : i32, i32
  }
  func.func @transform_4(%arg0: i32) -> (i32, i32) {
    %c0_i32 = arith.constant 0 : i32
    %c0_i32_0 = arith.constant 0 : i32
    %c0_i32_1 = arith.constant 0 : i32
    return %c0_i32, %c0_i32_0 : i32, i32
  }
  func.func @transform_5(%arg0: i32) -> (i32, i32) {
    %c0_i32 = arith.constant 0 : i32
    %c0_i32_0 = arith.constant 0 : i32
    %c0_i32_1 = arith.constant 0 : i32
    return %c0_i32, %c0_i32_0 : i32, i32
  }
  func.func @transform_6(%arg0: i32) -> (i32, i32) {
    %c0_i32 = arith.constant 0 : i32
    %c0_i32_0 = arith.constant 0 : i32
    %c0_i32_1 = arith.constant 0 : i32
    return %c0_i32, %c0_i32_0 : i32, i32
  }
  func.func @transform_7(%arg0: i32) -> (i32, i32) {
    %c0_i32 = arith.constant 0 : i32
    %c0_i32_0 = arith.constant 0 : i32
    %c0_i32_1 = arith.constant 0 : i32
    return %c0_i32, %c0_i32_0 : i32, i32
  }
  func.func @transform_8(%arg0: i32) -> (i32, i32) {
    %c0_i32 = arith.constant 0 : i32
    %c0_i32_0 = arith.constant 0 : i32
    return %arg0, %c0_i32 : i32, i32
  }
}

</mosaic_0001>

<llo_original>
// kernel: tpu_custom_call.1
$region0: #{tpu_custom_call.1}
  #allocation0 [shape = 'u32[]', space=smem, size = 0x4, offset = 0x4, fixed_abs, tag = 'smem constant byte address 0x4 - core index']
  #allocation1 [shape = 'u32[72,128]{1,0:T(1,128)}', space=vmem, size = 0x9000, scoped, tag = 'internal scratch']
  #allocation2 [shape = 'f32[8,32]{1,0:T(8,128)}', space=vmem, size = 0x1000, scoped, tag = 'scratch operand']
  #allocation3 [shape = 'f32[1,1]{1,0:T(1,128)S(1)}', space=vmem, size = 0x200, scoped, tag = 'scoped memory for tpu_custom_call.1']
  %s0 = inlined_call_operand.hbm [shape: f32[8,24], index: 0, kind: input, shape index: {}]
  %s1 = inlined_call_operand.hbm [shape: f32[8,8], index: 1, kind: input, shape index: {}]
  %s2 = inlined_call_operand.hbm [shape: bf16[32,128], index: 2, kind: input, shape index: {}]
  %s3 = inlined_call_operand.vmem [shape: f32[1,128], index: 3, kind: input, shape index: {}]
  %s4 = inlined_call_operand.hbm [shape: bf16[128,128], index: 4, kind: input, shape index: {}]
  %s5 = inlined_call_operand.vmem [shape: f32[1,128], index: 5, kind: input, shape index: {}]
  %s6 = inlined_call_operand.vmem [shape: f32[1,128], index: 6, kind: input, shape index: {}]
  %s7 = inlined_call_operand.<no memory space> [shape: f32[1,1], index: 7, kind: input, shape index: {}]
  %s8 = inlined_call_operand.hbm [shape: f32[1,8], index: 8, kind: output, shape index: {}]
  %s9 = sld [smem:[#allocation0]]
  $region58: #{tpu_custom_call.1} parent=0
    _
  %s11 = ssub.s32 1, %s9
  %s12 = scalar_select 0, %s11, %s9
  %v13 = vstv %s7
  %14 = vst [vmem:[#allocation3] sm:$0x1] %v13
  $region1: #{tpu_custom_call.1} parent=0
    #allocation4 [shape = 'u8[4096]{0}', space=vmem, size = 0x1000, scoped, tag = 'input window, operand 0, single buffered']
    #allocation5 [shape = 's32[1]{0}', space=sflag, size = 0x4, scoped, tag = 'scoped memory for tpu_custom_call.1']
    #allocation6 [shape = 's32[1]{0}', space=sflag, size = 0x4, scoped, tag = 'scoped memory for tpu_custom_call.1']
    #allocation7 [shape = 'u8[4096]{0}', space=vmem, size = 0x1000, scoped, tag = 'input window, operand 1, single buffered']
    #allocation8 [shape = 's32[1]{0}', space=sflag, size = 0x4, scoped, tag = 'scoped memory for tpu_custom_call.1']
    #allocation9 [shape = 'u8[8192]{0}', space=vmem, size = 0x2000, scoped, tag = 'input window, operand 2, single buffered']
    #allocation10 [shape = 'u8[32768]{0}', space=vmem, size = 0x8000, scoped, tag = 'input window, operand 4, single buffered']
    #allocation11 [shape = 's32[1]{0}', space=sflag, size = 0x4, scoped, tag = 'scoped memory for tpu_custom_call.1']
    #allocation12 [shape = 'u8[512]{0}', space=vmem, size = 0x400, scoped, tag = 'output window, operand 0, single buffered']
    %15 = vsyncpa [#allocation5], 0
    %16 = vsyncpa [#allocation8], 0
    %17 = vsyncpa [#allocation11], 0
    %18 = vsyncpa [#allocation6], 0
    // Predicated region
    $region2: #{tpu_custom_call.1} parent=1 // pred_check
      _
    $region3: #{tpu_custom_call.1} parent=1 // pred_check_branch
      %20 = sbr.rel (0) target = $region5
    $region4: #{tpu_custom_call.1} parent=1 // pred_region
      %22 = vsyncadd [#allocation5], 0
      %s24 = sshll.u32 %s0, 4
      %s25 = int_to_ptr.hbm [resolvable:$true] %s24
      %s26 = sshll.u32 [#allocation4], 4
      %s27 = int_to_ptr.vmem [resolvable:$true] %s26
      %29 = dma.hbm_to_vmem [thread:$0]  %s25, 128, %s27, [#allocation5]
    $region5: #{tpu_custom_call.1} parent=1 // pred_fallthru
      _
    // Predicated region
    $region6: #{tpu_custom_call.1} parent=1 // pred_check
      _
    $region7: #{tpu_custom_call.1} parent=1 // pred_check_branch
      %31 = sbr.rel (0) target = $region9
    $region8: #{tpu_custom_call.1} parent=1 // pred_region
      %33 = vsyncadd [#allocation8], 0
      %s35 = sshll.u32 %s1, 4
      %s36 = int_to_ptr.hbm [resolvable:$true] %s35
      %s37 = sshll.u32 [#allocation7], 4
      %s38 = int_to_ptr.vmem [resolvable:$true] %s37
      %40 = dma.hbm_to_vmem [thread:$0]  %s36, 128, %s38, [#allocation8]
    $region9: #{tpu_custom_call.1} parent=1 // pred_fallthru
      _
    // Predicated region
    $region10: #{tpu_custom_call.1} parent=1 // pred_check
      _
    $region11: #{tpu_custom_call.1} parent=1 // pred_check_branch
      %42 = sbr.rel (0) target = $region13
    $region12: #{tpu_custom_call.1} parent=1 // pred_region
      %44 = vsyncadd [#allocation8], 0
      %s45 = sshll.u32 %s2, 4
      %s46 = int_to_ptr.hbm [resolvable:$true] %s45
      %s47 = sshll.u32 [#allocation9], 4
      %s48 = int_to_ptr.vmem [resolvable:$true] %s47
      %53 = dma.hbm_to_vmem [thread:$0]  %s46, 256, %s48, [#allocation8], 64, 64, 4
    $region13: #{tpu_custom_call.1} parent=1 // pred_fallthru
      _
    // Predicated region
    $region14: #{tpu_custom_call.1} parent=1 // pred_check
      _
    $region15: #{tpu_custom_call.1} parent=1 // pred_check_branch
      %55 = sbr.rel (0) target = $region17
    $region16: #{tpu_custom_call.1} parent=1 // pred_region
      _
    $region17: #{tpu_custom_call.1} parent=1 // pred_fallthru
      _
    // Predicated region
    $region18: #{tpu_custom_call.1} parent=1 // pred_check
      _
    $region19: #{tpu_custom_call.1} parent=1 // pred_check_branch
      %57 = sbr.rel (0) target = $region21
    $region20: #{tpu_custom_call.1} parent=1 // pred_region
      %59 = vsyncadd [#allocation11], 0
      %s60 = sshll.u32 %s4, 4
      %s61 = int_to_ptr.hbm [resolvable:$true] %s60
      %s62 = sshll.u32 [#allocation10], 4
      %s63 = int_to_ptr.vmem [resolvable:$true] %s62
      %68 = dma.hbm_to_vmem [thread:$0]  %s61, 1024, %s63, [#allocation11], 64, 64, 4
    $region21: #{tpu_custom_call.1} parent=1 // pred_fallthru
      _
    // Predicated region
    $region22: #{tpu_custom_call.1} parent=1 // pred_check
      _
    $region23: #{tpu_custom_call.1} parent=1 // pred_check_branch
      %70 = sbr.rel (0) target = $region25
    $region24: #{tpu_custom_call.1} parent=1 // pred_region
      _
    $region25: #{tpu_custom_call.1} parent=1 // pred_fallthru
      _
    // Predicated region
    $region26: #{tpu_custom_call.1} parent=1 // pred_check
      _
    $region27: #{tpu_custom_call.1} parent=1 // pred_check_branch
      %72 = sbr.rel (0) target = $region29
    $region28: #{tpu_custom_call.1} parent=1 // pred_region
      _
    $region29: #{tpu_custom_call.1} parent=1 // pred_fallthru
      _
    // Predicated region
    $region30: #{tpu_custom_call.1} parent=1 // pred_check
      _
    $region31: #{tpu_custom_call.1} parent=1 // pred_check_branch
      %74 = sbr.rel (0) target = $region33
    $region32: #{tpu_custom_call.1} parent=1 // pred_region
      _
    $region33: #{tpu_custom_call.1} parent=1 // pred_fallthru
      _
    // Predicated region
    $region34: #{tpu_custom_call.1} parent=1 // pred_check
      _
    $region35: #{tpu_custom_call.1} parent=1 // pred_check_branch
      %76 = sbr.rel (0) target = $region37
    $region36: #{tpu_custom_call.1} parent=1 // pred_region
      %78 = dma.done [#allocation5], 128
    $region37: #{tpu_custom_call.1} parent=1 // pred_fallthru
      _
    // Predicated region
    $region38: #{tpu_custom_call.1} parent=1 // pred_check
      _
    $region39: #{tpu_custom_call.1} parent=1 // pred_check_branch
      %80 = sbr.rel (0) target = $region41
    $region40: #{tpu_custom_call.1} parent=1 // pred_region
      %82 = dma.done [#allocation8], 128
    $region41: #{tpu_custom_call.1} parent=1 // pred_fallthru
      _
    // Predicated region
    $region42: #{tpu_custom_call.1} parent=1 // pred_check
      _
    $region43: #{tpu_custom_call.1} parent=1 // pred_check_branch
      %84 = sbr.rel (0) target = $region45
    $region44: #{tpu_custom_call.1} parent=1 // pred_region
      %86 = dma.done [#allocation8], 256
    $region45: #{tpu_custom_call.1} parent=1 // pred_fallthru
      _
    // Predicated region
    $region46: #{tpu_custom_call.1} parent=1 // pred_check
      _
    $region47: #{tpu_custom_call.1} parent=1 // pred_check_branch
      %88 = sbr.rel (0) target = $region49
    $region48: #{tpu_custom_call.1} parent=1 // pred_region
      %90 = dma.done [#allocation11], 1024
    $region49: #{tpu_custom_call.1} parent=1 // pred_fallthru
      _
    %v92 = vld [vmem:[#allocation4] sm:$0xff]
    %vm93 = vcmask 195584
    %94 = vst.msk [vmem:[#allocation2] sm:$0xff] %vm93, %v92
    %v95 = vld [vmem:[#allocation7] sm:$0xff]
    %97 = vrot.lane.b32.xlu0 %v95, 24
    %v98 = vpop.permute.xlu0 %97
    %vm100 = vcmask 261312
    %101 = vst.msk [vmem:[#allocation2] sm:$0xff] %vm100, %v98
    %v102 = vld [vmem:[#allocation2] sm:$0xff]
    %v103 = vpack.c.bf16 %v102, %v102
    %v104 = vld [vmem:[#allocation9] sm:$0xf]
    %v105 = vld [vmem:[#allocation9 + $0x4] sm:$0xf]
    %v106 = vld [vmem:[#allocation9 + $0x8] sm:$0xf]
    %v107 = vld [vmem:[#allocation9 + $0xc] sm:$0xf]
    %v108 = vld [vmem:[%s3] sm:$0x1]
    %v110 = vperm.slane %v108, 0
    %v116 = vunpack.c.l.b16 %v104
    %v117 = vunpack.c.l.b16 %v105
    %v118 = vunpack.c.l.b16 %v106
    %v119 = vunpack.c.l.b16 %v107
    %v120 = vpack.c.b16 %v117, %v116
    %v121 = vpack.c.b16 %v119, %v118
    %vm124 = vcmask 261120
    %v126 = vsel %vm124, %v103, 0
    %128 = vmatpush.bf16.msra.mxu0 0
    %129 = vmatpush.bf16.msra.mxu0 0
    %130 = vmatpush.bf16.msra.mxu0 0
    %131 = vmatpush.bf16.msra.mxu0 0
    %132 = vmatpush.bf16.msra.mxu0 0
    %133 = vmatpush.bf16.msra.mxu0 0
    %134 = vmatpush.bf16.msra.mxu0 %v121
    %135 = vmatpush.bf16.msra.mxu0 %v120
    %136 = vmatmul.bf16.gmra.mxu0 %v126
    %v137 = vpop.f32.mrf.mxu0
    %v138 = vadd.f32 %v110, %v137
    %v139 = vpop.f32.mrf.mxu0
    %140 = vdwg.mxu0
    %v141 = vmax.f32 %v138, 0.0
    %v142 = vpack.c.bf16 %v141, %v141
    %v143 = vld [vmem:[#allocation10] sm:$0xf]
    %v144 = vld [vmem:[#allocation10 + $0x4] sm:$0xf]
    %v145 = vld [vmem:[#allocation10 + $0x8] sm:$0xf]
    %v146 = vld [vmem:[#allocation10 + $0xc] sm:$0xf]
    %v147 = vld [vmem:[#allocation10 + $0x10] sm:$0xf]
    %v148 = vld [vmem:[#allocation10 + $0x14] sm:$0xf]
    %v149 = vld [vmem:[#allocation10 + $0x18] sm:$0xf]
    %v150 = vld [vmem:[#allocation10 + $0x1c] sm:$0xf]
    %v151 = vld [vmem:[#allocation10 + $0x20] sm:$0xf]
    %v152 = vld [vmem:[#allocation10 + $0x24] sm:$0xf]
    %v153 = vld [vmem:[#allocation10 + $0x28] sm:$0xf]
    %v154 = vld [vmem:[#allocation10 + $0x2c] sm:$0xf]
    %v155 = vld [vmem:[#allocation10 + $0x30] sm:$0xf]
    %v156 = vld [vmem:[#allocation10 + $0x34] sm:$0xf]
    %v157 = vld [vmem:[#allocation10 + $0x38] sm:$0xf]
    %v158 = vld [vmem:[#allocation10 + $0x3c] sm:$0xf]
    %v159 = vld [vmem:[%s5] sm:$0x1]
    %v161 = vperm.slane %v159, 0
    %v179 = vunpack.c.l.b16 %v143
    %v180 = vunpack.c.l.b16 %v144
    %v181 = vunpack.c.l.b16 %v145
    %v182 = vunpack.c.l.b16 %v146
    %v183 = vunpack.c.l.b16 %v147
    %v184 = vunpack.c.l.b16 %v148
    %v185 = vunpack.c.l.b16 %v149
    %v186 = vunpack.c.l.b16 %v150
    %v187 = vunpack.c.l.b16 %v151
    %v188 = vunpack.c.l.b16 %v152
    %v189 = vunpack.c.l.b16 %v153
    %v190 = vunpack.c.l.b16 %v154
    %v191 = vunpack.c.l.b16 %v155
    %v192 = vunpack.c.l.b16 %v156
    %v193 = vunpack.c.l.b16 %v157
    %v194 = vunpack.c.l.b16 %v158
    %v195 = vpack.c.b16 %v180, %v179
    %v196 = vpack.c.b16 %v182, %v181
    %v197 = vpack.c.b16 %v184, %v183
    %v198 = vpack.c.b16 %v186, %v185
    %v199 = vpack.c.b16 %v188, %v187
    %v200 = vpack.c.b16 %v190, %v189
    %v201 = vpack.c.b16 %v192, %v191
    %v202 = vpack.c.b16 %v194, %v193
    %211 = vmatpush.bf16.msra.mxu0 %v202
    %212 = vmatpush.bf16.msra.mxu0 %v201
    %213 = vmatpush.bf16.msra.mxu0 %v200
    %214 = vmatpush.bf16.msra.mxu0 %v199
    %215 = vmatpush.bf16.msra.mxu0 %v198
    %216 = vmatpush.bf16.msra.mxu0 %v197
    %217 = vmatpush.bf16.msra.mxu0 %v196
    %218 = vmatpush.bf16.msra.mxu0 %v195
    %219 = vmatmul.bf16.gmra.mxu0 %v142
    %v220 = vpop.f32.mrf.mxu0
    %v221 = vadd.f32 %v161, %v220
    %v222 = vpop.f32.mrf.mxu0
    %223 = vdwg.mxu0
    %v224 = vmax.f32 %v221, 0.0
    %v225 = vld [vmem:[%s6] sm:$0x1]
    %v226 = vld [vmem:[#allocation3] sm:$0x1]
    %228 = vset.pattern.permute.xlu0 0
    %229 = vperm.xlu0 %228, %v226
    %v230 = vpop.permute.xlu0 %229
    %v232 = vperm.slane %v230, 0
    %233 = vmatpush.xpose.msra.mxu0 0.0
    %234 = vmatpush.xpose.msra.mxu0 0.0
    %235 = vmatpush.xpose.msra.mxu0 0.0
    %236 = vmatpush.xpose.msra.mxu0 0.0
    %237 = vmatpush.xpose.msra.mxu0 0.0
    %238 = vmatpush.xpose.msra.mxu0 0.0
    %239 = vmatpush.xpose.msra.mxu0 0.0
    %240 = vmatpush.xpose.msra.mxu0 0.0
    %241 = vmatpush.xpose.msra.mxu0 0.0
    %242 = vmatpush.xpose.msra.mxu0 0.0
    %243 = vmatpush.xpose.msra.mxu0 0.0
    %244 = vmatpush.xpose.msra.mxu0 0.0
    %245 = vmatpush.xpose.msra.mxu0 0.0
    %246 = vmatpush.xpose.msra.mxu0 0.0
    %247 = vmatpush.xpose.msra.mxu0 0.0
    %248 = vmatpush.xpose.msra.mxu0 %v224
    %249 = vmatmul.f32.gmra.mxu0 %v225
    %v250 = vpop.f32.mrf.mxu0
    %v251 = vadd.f32 %v232, %v250
    %252 = vdwg.mxu0
    %vm253 = vcmask 57344
    %254 = vst.msk [vmem:[#allocation12] sm:$0x1] %vm253, %v251
    // Predicated region
    $region50: #{tpu_custom_call.1} parent=1 // pred_check
      _
    $region51: #{tpu_custom_call.1} parent=1 // pred_check_branch
      %256 = sbr.rel (0) target = $region53
    $region52: #{tpu_custom_call.1} parent=1 // pred_region
      %258 = vsyncadd [#allocation6], 0
      %s260 = sshll.u32 [#allocation12], 4
      %s261 = int_to_ptr.vmem [resolvable:$true] %s260
      %s262 = sshll.u32 %s8, 4
      %s263 = int_to_ptr.hbm [resolvable:$true] %s262
      %265 = dma.vmem_to_hbm [thread:$0]  %s261, 16, %s263, [#allocation6]
    $region53: #{tpu_custom_call.1} parent=1 // pred_fallthru
      _
    // Predicated region
    $region54: #{tpu_custom_call.1} parent=1 // pred_check
      _
    $region55: #{tpu_custom_call.1} parent=1 // pred_check_branch
      %267 = sbr.rel (0) target = $region57
    $region56: #{tpu_custom_call.1} parent=1 // pred_region
      %269 = dma.done [#allocation6], 16
    $region57: #{tpu_custom_call.1} parent=1 // pred_fallthru
      _
    %270 = vsyncpa [#allocation5], 1
    %271 = vsyncpa [#allocation8], 1
    %272 = vsyncpa [#allocation11], 1
    %273 = vsyncpa [#allocation6], 1

</llo_original>
